<compile_context>
chip_gen: v7x
topology: tpu7x:2x2x1
jax: 0.10.0
libtpu: 0.0.40
codegen_flags: <defaults>
</compile_context>

<pallas_src>
import jax
import jax.numpy as jnp
from jax import lax
from jax.experimental import pallas as pl
from jax.experimental.pallas import tpu as pltpu


def _cdiv(a, b):
    return -(-a // b)


def _round_up(a, b):
    return _cdiv(a, b) * b


def _sse3d_kernel(x_ref, w_ref, b_ref, o_ref):
    # x_ref : (1, C, tS1, 128)  VMEM input tile (spatial fills sublanes + lanes)
    # w_ref : (C,)              SMEM conv weights (1x1x1 conv == per-channel scalar)
    # b_ref : (1,)              SMEM conv bias
    # o_ref : (1, C, tS1, 128)  VMEM output tile
    C = x_ref.shape[1]
    out_dtype = o_ref.dtype

    if C < 32:
        # Small C: straight-line unroll. Planes are NOT kept live across both loops;
        # the excite loop re-reads x_ref from VMEM (cheap) to bound vreg pressure.
        acc = x_ref[0, 0].astype(jnp.float32) * w_ref[0]
        for c in range(1, C):
            acc = acc + x_ref[0, c].astype(jnp.float32) * w_ref[c]
        gate = jax.nn.sigmoid(acc + b_ref[0])                      # (tS1, 128), EUP
        for c in range(C):
            o_ref[0, c] = (x_ref[0, c].astype(jnp.float32) * gate).astype(out_dtype)
    else:
        # Large C: fori_loop keeps code size and live ranges bounded while unroll=4
        # gives the LLO scheduler enough visibility to hide VMEM reloads.
        def squeeze(c, acc):
            return acc + x_ref[0, c].astype(jnp.float32) * w_ref[c]

        zero = jnp.zeros((x_ref.shape[2], x_ref.shape[3]), jnp.float32)
        acc = lax.fori_loop(0, C, squeeze, zero, unroll=4)
        gate = jax.nn.sigmoid(acc + b_ref[0])

        def excite(c, carry):
            o_ref[0, c] = (x_ref[0, c].astype(jnp.float32) * gate).astype(out_dtype)
            return carry

        lax.fori_loop(0, C, excite, 0, unroll=4)


def _vmem_capacity_bytes():
    try:
        return int(pltpu.get_tpu_info().vmem_capacity_bytes)
    except Exception:
        return 64 * 1024 * 1024   # v7x floor -> conservative for every generation


def _pick_tile(S1_min, B, C, LS, itemsize, vmem_cap, sub):
    """Choose the sublane tile tS1 and number of spatial tiles."""
    in_bytes_per_row = C * LS * itemsize          # input bytes per sublane row of one block
    io_bytes_per_row = 4 * in_bytes_per_row       # double-buffered (in + out)

    # Hard ceiling: double-buffered in+out footprint <= ~35% of VMEM (headroom for Mosaic).
    t_ceil = max(sub, (int(0.35 * vmem_cap) // io_bytes_per_row) // sub * sub)

    # Soft target: >= 8 total grid steps so prefetch(i+1)/writeback(i-1) overlap exists
    # and both v7x TensorCores stay busy.
    min_steps = 8
    need_tiles = _cdiv(min_steps, B)
    t_steps = max(sub, (_cdiv(S1_min, need_tiles) // sub) * sub)

    # Per-step input-block floor: amortize the ~0.35 us/step overhead.
    # v7x (64 MiB VMEM, 3.2 TB/s HBM) wants ~2-4 MiB blocks; v5e/v6e are fine from ~1 MiB.
    floor_bytes = (2 << 20) if vmem_cap <= (64 << 20) else (1 << 20)
    t_floor = max(sub, _round_up(_cdiv(floor_bytes, in_bytes_per_row), sub))

    tS1 = max(t_steps, t_floor)             # block-size floor wins over step count when they clash
    tS1 = min(tS1, t_ceil)                  # VMEM ceiling is a hard limit
    tS1 = min(tS1, _round_up(S1_min, sub))  # never larger than the (padded) spatial extent
    tS1 = max(tS1, sub)

    n_tiles = _cdiv(S1_min, tS1)

    # Nudge total step count to be even (2-TC balance on v7x) when cheap to do so.
    if (B * n_tiles) % 2 == 1 and n_tiles > 1:
        tS1_alt = max(sub, _round_up(_cdiv(S1_min, n_tiles + 1), sub))
        n_alt = _cdiv(S1_min, tS1_alt)
        if (B * n_alt) % 2 == 0 and tS1_alt * io_bytes_per_row <= int(0.35 * vmem_cap):
            tS1, n_tiles = tS1_alt, n_alt

    return tS1, n_tiles


def spatial_se_3d(x, weight, bias):
    """
    x      : (B, C, D, H, W) float32
    weight : (C,)  Conv3d(C, 1, kernel_size=1) weight, flattened from (1, C, 1, 1, 1)
    bias   : (1,)  Conv3d bias
    returns: (B, C, D, H, W)
    """
    B, C, D, H, W = x.shape
    assert weight.shape == (C,)
    S = D * H * W
    itemsize = jnp.dtype(x.dtype).itemsize
    LS = 128
    sub = max(8, 32 // itemsize)          # dtype-aware sublane granularity: f32->8, bf16->16

    vmem_cap = _vmem_capacity_bytes()
    S1_min = _cdiv(S, LS)
    tS1, n_tiles = _pick_tile(S1_min, B, C, LS, itemsize, vmem_cap, sub)

    S1_pad = n_tiles * tS1
    S_pad = S1_pad * LS

    # Wrapper-side pad to a full (n_tiles * tS1 * 128) spatial extent: keeps every kernel
    # block full-tiled and lane-dense; padded zeros are gated and sliced away afterwards.
    x_flat = x.reshape(B, C, S)
    if S_pad != S:
        x_flat = jnp.pad(x_flat, ((0, 0), (0, 0), (0, S_pad - S)))
    x4 = x_flat.reshape(B, C, S1_pad, LS)

    footprint = 4 * C * tS1 * LS * itemsize        # double-buffered in + out
    vmem_limit = int(min(0.9 * vmem_cap, max(2.0 * footprint + (8 << 20), 32 << 20)))
    vmem_limit = max(vmem_limit, int(1.5 * footprint))

    block = (1, C, tS1, LS)

    def x_map(b, t):
        return (b, 0, t, 0)

    out4 = pl.pallas_call(
        _sse3d_kernel,
        out_shape=jax.ShapeDtypeStruct((B, C, S1_pad, LS), x.dtype),
        grid_spec=pltpu.PrefetchScalarGridSpec(
            num_scalar_prefetch=0,
            grid=(B, n_tiles),
            in_specs=[
                pl.BlockSpec(block, x_map),
                pl.BlockSpec(memory_space=pltpu.MemorySpace.SMEM),   # weight (C,)
                pl.BlockSpec(memory_space=pltpu.MemorySpace.SMEM),   # bias (1,)
            ],
            out_specs=pl.BlockSpec(block, x_map),
        ),
        compiler_params=pltpu.CompilerParams(
            dimension_semantics=("parallel", "parallel"),
            vmem_limit_bytes=vmem_limit,
        ),
    )(x4, weight.astype(jnp.float32), bias.reshape(1).astype(jnp.float32))

    out = out4.reshape(B, C, S_pad)
    if S_pad != S:
        out = out[:, :, :S]
    return out.reshape(B, C, D, H, W)


def reference(x, weight, bias):
    # Pure-JAX reference: Conv3d(C, 1, 1) == weighted channel sum + bias.
    logits = jnp.einsum("bcdhw,c->bdhw", x, weight) + bias[0]     # (B, D, H, W)
    gate = jax.nn.sigmoid(logits)[:, None, :, :, :]               # (B, 1, D, H, W)
    return x * gate


if __name__ == "__main__":
    key = jax.random.PRNGKey(0)
    kx, kw, kb, kx2 = jax.random.split(key, 4)

    B, C, D, H, W = 2, 4, 16, 16, 16     # S = D*H*W = 4096 = 32 x 128 lanes (aligned path)

    x = jax.random.normal(kx, (B, C, D, H, W), dtype=jnp.float32)
    # Deterministic synthetic Conv3d(C, 1, 1) parameters (kaiming-ish scale).
    weight = jax.random.normal(kw, (C,), dtype=jnp.float32) * (1.0 / jnp.sqrt(C))
    bias = jax.random.normal(kb, (1,), dtype=jnp.float32) * 0.1

    out = jax.block_until_ready(spatial_se_3d(x, weight, bias))
    ref = reference(x, weight, bias)
    assert out.shape == (B, C, D, H, W)
    assert jnp.allclose(out, ref, atol=1e-5, rtol=1e-5), "mismatch vs reference (aligned S)"

    # Ragged spatial size (S not a multiple of 128) -> exercises wrapper-side pad/slice path.
    D2, H2, W2 = 5, 6, 7                  # S = 210
    x2 = jax.random.normal(kx2, (B, C, D2, H2, W2), dtype=jnp.float32)
    out2 = jax.block_until_ready(spatial_se_3d(x2, weight, bias))
    ref2 = reference(x2, weight, bias)
    assert out2.shape == (B, C, D2, H2, W2)
    assert jnp.allclose(out2, ref2, atol=1e-5, rtol=1e-5), "mismatch vs reference (ragged S)"

    print("KERNEL_OK")
</pallas_src>

<mosaic_0001>
module attributes {stable_mosaic.version = 11 : i64} {
  func.func @_sse3d_kernel(%arg0: i32, %arg1: i32, %arg2: memref<1x4x32x128xf32, #tpu.memory_space<vmem>>, %arg3: memref<4xf32, #tpu.memory_space<smem>>, %arg4: memref<1xf32, #tpu.memory_space<smem>>, %arg5: memref<1x4x32x128xf32, #tpu.memory_space<vmem>>) attributes {dimension_semantics = [#tpu.dimension_semantics<parallel>, #tpu.dimension_semantics<parallel>], iteration_bounds = array<i64: 2, 1>, scalar_prefetch = 0 : i64, scratch_operands = 0 : i64, tpu.core_type = #tpu.core_type<tc>, window_params = [{transform_indices = @transform_0, window_bounds = array<i64: 1, 4, 32, 128>}, {transform_indices = @transform_1, window_bounds = array<i64: 4>}, {transform_indices = @transform_2, window_bounds = array<i64: 1>}, {transform_indices = @transform_3, window_bounds = array<i64: 1, 4, 32, 128>}]} {
    %c0 = arith.constant 0 : index
    %c0_0 = arith.constant 0 : index
    %c0_1 = arith.constant 0 : index
    %c0_2 = arith.constant 0 : index
    %0 = vector.load %arg2[%c0, %c0_0, %c0_1, %c0_2] : memref<1x4x32x128xf32, #tpu.memory_space<vmem>>, vector<1x1x32x128xf32>
    %1 = vector.shape_cast %0 : vector<1x1x32x128xf32> to vector<32x128xf32>
    %c0_3 = arith.constant 0 : index
    %2 = memref.load %arg3[%c0_3] : memref<4xf32, #tpu.memory_space<smem>>
    %3 = vector.broadcast %2 : f32 to vector<32x128xf32>
    %4 = arith.mulf %1, %3 : vector<32x128xf32>
    %c0_4 = arith.constant 0 : index
    %c1 = arith.constant 1 : index
    %c0_5 = arith.constant 0 : index
    %c0_6 = arith.constant 0 : index
    %5 = vector.load %arg2[%c0_4, %c1, %c0_5, %c0_6] : memref<1x4x32x128xf32, #tpu.memory_space<vmem>>, vector<1x1x32x128xf32>
    %6 = vector.shape_cast %5 : vector<1x1x32x128xf32> to vector<32x128xf32>
    %c1_7 = arith.constant 1 : index
    %7 = memref.load %arg3[%c1_7] : memref<4xf32, #tpu.memory_space<smem>>
    %8 = vector.broadcast %7 : f32 to vector<32x128xf32>
    %9 = arith.mulf %6, %8 : vector<32x128xf32>
    %10 = arith.addf %4, %9 : vector<32x128xf32>
    %c0_8 = arith.constant 0 : index
    %c2 = arith.constant 2 : index
    %c0_9 = arith.constant 0 : index
    %c0_10 = arith.constant 0 : index
    %11 = vector.load %arg2[%c0_8, %c2, %c0_9, %c0_10] : memref<1x4x32x128xf32, #tpu.memory_space<vmem>>, vector<1x1x32x128xf32>
    %12 = vector.shape_cast %11 : vector<1x1x32x128xf32> to vector<32x128xf32>
    %c2_11 = arith.constant 2 : index
    %13 = memref.load %arg3[%c2_11] : memref<4xf32, #tpu.memory_space<smem>>
    %14 = vector.broadcast %13 : f32 to vector<32x128xf32>
    %15 = arith.mulf %12, %14 : vector<32x128xf32>
    %16 = arith.addf %10, %15 : vector<32x128xf32>
    %c0_12 = arith.constant 0 : index
    %c3 = arith.constant 3 : index
    %c0_13 = arith.constant 0 : index
    %c0_14 = arith.constant 0 : index
    %17 = vector.load %arg2[%c0_12, %c3, %c0_13, %c0_14] : memref<1x4x32x128xf32, #tpu.memory_space<vmem>>, vector<1x1x32x128xf32>
    %18 = vector.shape_cast %17 : vector<1x1x32x128xf32> to vector<32x128xf32>
    %c3_15 = arith.constant 3 : index
    %19 = memref.load %arg3[%c3_15] : memref<4xf32, #tpu.memory_space<smem>>
    %20 = vector.broadcast %19 : f32 to vector<32x128xf32>
    %21 = arith.mulf %18, %20 : vector<32x128xf32>
    %22 = arith.addf %16, %21 : vector<32x128xf32>
    %c0_16 = arith.constant 0 : index
    %23 = memref.load %arg4[%c0_16] : memref<1xf32, #tpu.memory_space<smem>>
    %24 = vector.broadcast %23 : f32 to vector<32x128xf32>
    %25 = arith.addf %22, %24 : vector<32x128xf32>
    %26 = arith.negf %25 : vector<32x128xf32>
    %27 = math.exp %26 : vector<32x128xf32>
    %cst = arith.constant 1.000000e+00 : f32
    %28 = vector.broadcast %cst : f32 to vector<32x128xf32>
    %29 = arith.addf %28, %27 : vector<32x128xf32>
    %30 = arith.divf %28, %29 : vector<32x128xf32>
    %c0_17 = arith.constant 0 : index
    %c0_18 = arith.constant 0 : index
    %c0_19 = arith.constant 0 : index
    %c0_20 = arith.constant 0 : index
    %31 = vector.load %arg2[%c0_17, %c0_18, %c0_19, %c0_20] : memref<1x4x32x128xf32, #tpu.memory_space<vmem>>, vector<1x1x32x128xf32>
    %32 = vector.shape_cast %31 : vector<1x1x32x128xf32> to vector<32x128xf32>
    %33 = arith.mulf %32, %30 : vector<32x128xf32>
    %c0_21 = arith.constant 0 : index
    %c0_22 = arith.constant 0 : index
    %c0_23 = arith.constant 0 : index
    %c0_24 = arith.constant 0 : index
    %34 = vector.load %arg5[%c0_21, %c0_22, %c0_23, %c0_24] : memref<1x4x32x128xf32, #tpu.memory_space<vmem>>, vector<1x1x32x128xf32>
    %35 = vector.shape_cast %34 : vector<1x1x32x128xf32> to vector<32x128xf32>
    %36 = vector.shape_cast %33 : vector<32x128xf32> to vector<1x1x32x128xf32>
    tpu.vector_store %arg5[%c0_21, %c0_22, %c0_23, %c0_24], %36 {strides = array<i32>} : memref<1x4x32x128xf32, #tpu.memory_space<vmem>>, vector<1x1x32x128xf32>,
    %c0_25 = arith.constant 0 : index
    %c1_26 = arith.constant 1 : index
    %c0_27 = arith.constant 0 : index
    %c0_28 = arith.constant 0 : index
    %37 = vector.load %arg2[%c0_25, %c1_26, %c0_27, %c0_28] : memref<1x4x32x128xf32, #tpu.memory_space<vmem>>, vector<1x1x32x128xf32>
    %38 = vector.shape_cast %37 : vector<1x1x32x128xf32> to vector<32x128xf32>
    %39 = arith.mulf %38, %30 : vector<32x128xf32>
    %c0_29 = arith.constant 0 : index
    %c1_30 = arith.constant 1 : index
    %c0_31 = arith.constant 0 : index
    %c0_32 = arith.constant 0 : index
    %40 = vector.load %arg5[%c0_29, %c1_30, %c0_31, %c0_32] : memref<1x4x32x128xf32, #tpu.memory_space<vmem>>, vector<1x1x32x128xf32>
    %41 = vector.shape_cast %40 : vector<1x1x32x128xf32> to vector<32x128xf32>
    %42 = vector.shape_cast %39 : vector<32x128xf32> to vector<1x1x32x128xf32>
    tpu.vector_store %arg5[%c0_29, %c1_30, %c0_31, %c0_32], %42 {strides = array<i32>} : memref<1x4x32x128xf32, #tpu.memory_space<vmem>>, vector<1x1x32x128xf32>,
    %c0_33 = arith.constant 0 : index
    %c2_34 = arith.constant 2 : index
    %c0_35 = arith.constant 0 : index
    %c0_36 = arith.constant 0 : index
    %43 = vector.load %arg2[%c0_33, %c2_34, %c0_35, %c0_36] : memref<1x4x32x128xf32, #tpu.memory_space<vmem>>, vector<1x1x32x128xf32>
    %44 = vector.shape_cast %43 : vector<1x1x32x128xf32> to vector<32x128xf32>
    %45 = arith.mulf %44, %30 : vector<32x128xf32>
    %c0_37 = arith.constant 0 : index
    %c2_38 = arith.constant 2 : index
    %c0_39 = arith.constant 0 : index
    %c0_40 = arith.constant 0 : index
    %46 = vector.load %arg5[%c0_37, %c2_38, %c0_39, %c0_40] : memref<1x4x32x128xf32, #tpu.memory_space<vmem>>, vector<1x1x32x128xf32>
    %47 = vector.shape_cast %46 : vector<1x1x32x128xf32> to vector<32x128xf32>
    %48 = vector.shape_cast %45 : vector<32x128xf32> to vector<1x1x32x128xf32>
    tpu.vector_store %arg5[%c0_37, %c2_38, %c0_39, %c0_40], %48 {strides = array<i32>} : memref<1x4x32x128xf32, #tpu.memory_space<vmem>>, vector<1x1x32x128xf32>,
    %c0_41 = arith.constant 0 : index
    %c3_42 = arith.constant 3 : index
    %c0_43 = arith.constant 0 : index
    %c0_44 = arith.constant 0 : index
    %49 = vector.load %arg2[%c0_41, %c3_42, %c0_43, %c0_44] : memref<1x4x32x128xf32, #tpu.memory_space<vmem>>, vector<1x1x32x128xf32>
    %50 = vector.shape_cast %49 : vector<1x1x32x128xf32> to vector<32x128xf32>
    %51 = arith.mulf %50, %30 : vector<32x128xf32>
    %c0_45 = arith.constant 0 : index
    %c3_46 = arith.constant 3 : index
    %c0_47 = arith.constant 0 : index
    %c0_48 = arith.constant 0 : index
    %52 = vector.load %arg5[%c0_45, %c3_46, %c0_47, %c0_48] : memref<1x4x32x128xf32, #tpu.memory_space<vmem>>, vector<1x1x32x128xf32>
    %53 = vector.shape_cast %52 : vector<1x1x32x128xf32> to vector<32x128xf32>
    %54 = vector.shape_cast %51 : vector<32x128xf32> to vector<1x1x32x128xf32>
    tpu.vector_store %arg5[%c0_45, %c3_46, %c0_47, %c0_48], %54 {strides = array<i32>} : memref<1x4x32x128xf32, #tpu.memory_space<vmem>>, vector<1x1x32x128xf32>,
    return
  }
  func.func @transform_0(%arg0: i32, %arg1: i32) -> (i32, i32, i32, i32) {
    %c0_i32 = arith.constant 0 : i32
    %c0_i32_0 = arith.constant 0 : i32
    %c0_i32_1 = arith.constant 0 : i32
    return %arg0, %c0_i32, %arg1, %c0_i32_0 : i32, i32, i32, i32
  }
  func.func @transform_1(%arg0: i32, %arg1: i32) -> i32 {
    %c0_i32 = arith.constant 0 : i32
    %c0_i32_0 = arith.constant 0 : i32
    return %c0_i32 : i32
  }
  func.func @transform_2(%arg0: i32, %arg1: i32) -> i32 {
    %c0_i32 = arith.constant 0 : i32
    %c0_i32_0 = arith.constant 0 : i32
    return %c0_i32 : i32
  }
  func.func @transform_3(%arg0: i32, %arg1: i32) -> (i32, i32, i32, i32) {
    %c0_i32 = arith.constant 0 : i32
    %c0_i32_0 = arith.constant 0 : i32
    %c0_i32_1 = arith.constant 0 : i32
    return %arg0, %c0_i32, %arg1, %c0_i32_0 : i32, i32, i32, i32
  }
}

</mosaic_0001>

<llo_original>
// kernel: tpu_custom_call.1
$region0: #{tpu_custom_call.1}
  #allocation0 [shape = 'u32[]', space=smem, size = 0x4, offset = 0x4, fixed_abs, tag = 'smem constant byte address 0x4 - core index']
  #allocation1 [shape = 'u32[144,128]{1,0:T(1,128)}', space=vmem, size = 0x12000, scoped, tag = 'internal scratch']
  #allocation2 [shape = 'f32[1]{0:T(128)S(6)}', space=smem, size = 0x200, scoped, tag = 'scoped memory for tpu_custom_call.1']
  %s0 = inlined_call_operand.hbm [shape: f32[2,4,32,128], index: 0, kind: input, shape index: {}]
  %s1 = inlined_call_operand.vmem [shape: f32[4], index: 1, kind: input, shape index: {}]
  %s2 = inlined_call_operand.<no memory space> [shape: f32[1], index: 2, kind: input, shape index: {}]
  %s3 = inlined_call_operand.hbm [shape: f32[2,4,32,128], index: 3, kind: output, shape index: {}]
  %s4 = sld [smem:[#allocation0]]
  $region53: #{tpu_custom_call.1} parent=0
    _
  %s6 = ssub.s32 1, %s4
  %s7 = scalar_select 0, %s6, %s4
  %8 = sst [smem:[#allocation2]] %s2
  $region1: #{tpu_custom_call.1} parent=0
    #allocation3 [shape = 'u8[131072]{0}', space=vmem, size = 0x20000, scoped, tag = 'input window, operand 0']
    #allocation4 [shape = 's32[2]{0}', space=sflag, size = 0x8, scoped, tag = 'scoped memory for tpu_custom_call.1']
    #allocation5 [shape = 's32[2]{0}', space=sflag, size = 0x8, scoped, tag = 'scoped memory for tpu_custom_call.1']
    #allocation6 [shape = 's32[2]{0}', space=sflag, size = 0x8, scoped, tag = 'scoped memory for tpu_custom_call.1']
    #allocation7 [shape = 'u8[512]{0}', space=smem, size = 0x200, scoped, tag = 'input window, operand 1, single buffered']
    #allocation8 [shape = 'u8[131072]{0}', space=vmem, size = 0x20000, scoped, tag = 'output window, operand 0']
    %9 = vsyncpa [#allocation4], 0
    %s10 = scalar_lea.sflag [#allocation4], 1
    %11 = vsyncpa %s10, 0
    %12 = vsyncpa [#allocation6], 0
    %13 = vsyncpa [#allocation5], 0
    %s14 = scalar_lea.sflag [#allocation5], 1
    %15 = vsyncpa %s14, 0
    loop: start=0, step=1, limit=4
    $region2: #{tpu_custom_call.1} parent=1 // loop_pre_header
      _
    $region3: #{tpu_custom_call.1} parent=1 // loop_header
      %s17 = sphi 0, %s21
      %p18 = scmp.ge.s32.totalorder %s17, 4
      %s24 = sphi 0, %s36
      %s25 = sphi 0, %s32
      %s26 = sphi 0, %s24
      %s27 = sphi 0, %s25
      %s28 = sphi 0, %s26
      %s29 = sphi 0, %s27
      %s41 = sphi 0, %s43
      %s44 = sphi 0, %s41
      %s45 = sphi 0, %s44
      %s61 = sphi 0, %s45
      %s65 = sphi 0, %s65
      %s67 = sphi 0, %s65
      %s68 = sphi 0, %s67
      %s82 = sphi 0, %s68
      %s86 = sphi 0, %s86
      %s88 = sphi 0, %s86
      %s89 = sphi 0, %s88
      %s103 = sphi 0, %s89
      %s111 = sphi 0, %s113
      %s114 = sphi 0, %s111
      %s115 = sphi 0, %s114
      %s131 = sphi 0, %s115
    $region4: #{tpu_custom_call.1} parent=1 // loop_header_branch
      %20 = sbr.rel (%p18) target = $region8
    $region5: #{tpu_custom_call.1} parent=1 // loop_body
      %s22 = ssub.s32 %s17, 1
      %s23 = ssub.s32 %s17, 2
      %s30 = sadd.s32 1, %s25
      %p31 = scmp.ge.s32.totalorder %s30, 1
      %s32 = scalar_select %p31, 0, %s30
      %s33 = sadd.s32 1, %s24
      %s34 = scalar_select %p31, %s33, %s24
      %p35 = scmp.ge.s32.totalorder %s34, 2
      %s36 = scalar_select %p35, 0, %s34
      %s37 = ssub.s32 %s24, %s36
      %s38 = ssub.s32 %s25, %s32
      %s39 = sor.u32 %s37, %s38
      %p40 = scmp.eq.s32.totalorder %s39, 0
      %s42 = sadd.s32 %s41, 1
      %s43 = scalar_select %p40, %s41, %s42
      %p46 = pneg %p40
      %p47 = scmp.eq.s32.totalorder %s17, 1
      %p48 = por %p46, %p47
      %p49 = scmp.ne.s32.totalorder %s41, %s44
      %p50 = scmp.eq.s32.totalorder %s17, 0
      %p51 = por %p49, %p50
      %p52 = scmp.ne.s32.totalorder %s41, %s44
      %p53 = scmp.eq.s32.totalorder %s22, 1
      %p54 = por %p52, %p53
      %p55 = scmp.ne.s32.totalorder %s44, %s45
      %p56 = scmp.eq.s32.totalorder %s22, 0
      %p57 = por %p55, %p56
      %p58 = scmp.ne.s32.totalorder %s44, %s45
      %p59 = scmp.eq.s32.totalorder %s23, 1
      %p60 = por %p58, %p59
      %p62 = scmp.ne.s32.totalorder %s45, %s61
      %p63 = scmp.eq.s32.totalorder %s23, 0
      %p64 = por %p62, %p63
      %s66 = sadd.s32 %s65, 1
      %p69 = scmp.eq.s32.totalorder %s17, 1
      %p70 = scmp.ne.s32.totalorder %s65, %s67
      %p71 = scmp.eq.s32.totalorder %s17, 0
      %p72 = por %p70, %p71
      %p73 = scmp.ne.s32.totalorder %s65, %s67
      %p74 = scmp.eq.s32.totalorder %s22, 1
      %p75 = por %p73, %p74
      %p76 = scmp.ne.s32.totalorder %s67, %s68
      %p77 = scmp.eq.s32.totalorder %s22, 0
      %p78 = por %p76, %p77
      %p79 = scmp.ne.s32.totalorder %s67, %s68
      %p80 = scmp.eq.s32.totalorder %s23, 1
      %p81 = por %p79, %p80
      %p83 = scmp.ne.s32.totalorder %s68, %s82
      %p84 = scmp.eq.s32.totalorder %s23, 0
      %p85 = por %p83, %p84
      %s87 = sadd.s32 %s86, 1
      %p90 = scmp.eq.s32.totalorder %s17, 1
      %p91 = scmp.ne.s32.totalorder %s86, %s88
      %p92 = scmp.eq.s32.totalorder %s17, 0
      %p93 = por %p91, %p92
      %p94 = scmp.ne.s32.totalorder %s86, %s88
      %p95 = scmp.eq.s32.totalorder %s22, 1
      %p96 = por %p94, %p95
      %p97 = scmp.ne.s32.totalorder %s88, %s89
      %p98 = scmp.eq.s32.totalorder %s22, 0
      %p99 = por %p97, %p98
      %p100 = scmp.ne.s32.totalorder %s88, %s89
      %p101 = scmp.eq.s32.totalorder %s23, 1
      %p102 = por %p100, %p101
      %p104 = scmp.ne.s32.totalorder %s89, %s103
      %p105 = scmp.eq.s32.totalorder %s23, 0
      %p106 = por %p104, %p105
      %s107 = ssub.s32 %s24, %s36
      %s108 = ssub.s32 %s25, %s32
      %s109 = sor.u32 %s107, %s108
      %p110 = scmp.eq.s32.totalorder %s109, 0
      %s112 = sadd.s32 %s111, 1
      %s113 = scalar_select %p110, %s111, %s112
      %p116 = pneg %p110
      %p117 = scmp.eq.s32.totalorder %s17, 1
      %p118 = por %p116, %p117
      %p119 = scmp.ne.s32.totalorder %s111, %s114
      %p120 = scmp.eq.s32.totalorder %s17, 0
      %p121 = por %p119, %p120
      %p122 = scmp.ne.s32.totalorder %s111, %s114
      %p123 = scmp.eq.s32.totalorder %s22, 1
      %p124 = por %p122, %p123
      %p125 = scmp.ne.s32.totalorder %s114, %s115
      %p126 = scmp.eq.s32.totalorder %s22, 0
      %p127 = por %p125, %p126
      %p128 = scmp.ne.s32.totalorder %s114, %s115
      %p129 = scmp.eq.s32.totalorder %s23, 1
      %p130 = por %p128, %p129
      %p132 = scmp.ne.s32.totalorder %s115, %s131
      %p133 = scmp.eq.s32.totalorder %s23, 0
      %p134 = por %p132, %p133
      %p135 = scmp.le.s32.totalorder 1, %s17
      %p136 = scmp.lt.s32.totalorder %s17, 3
      %p137 = pnand %p135, %p136
      %p138 = pneg %p137
      // Predicated region
      $region9: #{tpu_custom_call.1} parent=5 // pred_check
        _
      $region10: #{tpu_custom_call.1} parent=5 // pred_check_branch
        %140 = sbr.rel (%p137) target = $region12
      $region11: #{tpu_custom_call.1} parent=5 // pred_region
        %s141 = ssub.s32 %s17, 1
        // Predicated region
        $region13: #{tpu_custom_call.1} parent=11 // pred_check
          %p142 = pneg %p78
        $region14: #{tpu_custom_call.1} parent=11 // pred_check_branch
          %144 = sbr.rel (%p142) target = $region16
        $region15: #{tpu_custom_call.1} parent=11 // pred_region
          %s146 = ssub.s32 16, 16
          %147 = vsyncadd [#allocation6], %s146
          %s149 = sshll.u32 %s1, 4
          %s150 = int_to_ptr.vmem [resolvable:$true] %s149
          %152 = dma.vmem_to_smem %s150, 16, [#allocation7], [#allocation6]
        $region16: #{tpu_custom_call.1} parent=11 // pred_fallthru
          _
        // Predicated region
        $region17: #{tpu_custom_call.1} parent=11 // pred_check
          %p153 = pneg %p99
        $region18: #{tpu_custom_call.1} parent=11 // pred_check_branch
          %155 = sbr.rel (%p153) target = $region20
        $region19: #{tpu_custom_call.1} parent=11 // pred_region
          _
        $region20: #{tpu_custom_call.1} parent=11 // pred_fallthru
          _
      $region12: #{tpu_custom_call.1} parent=5 // pred_fallthru
        _
      %p156 = scmp.lt.s32.totalorder %s17, 2
      // Predicated region
      $region21: #{tpu_custom_call.1} parent=5 // pred_check
        %p157 = pneg %p156
      $region22: #{tpu_custom_call.1} parent=5 // pred_check_branch
        %159 = sbr.rel (%p157) target = $region24
      $region23: #{tpu_custom_call.1} parent=5 // pred_region
        // Predicated region
        $region25: #{tpu_custom_call.1} parent=23 // pred_check
          %p160 = pneg %p51
        $region26: #{tpu_custom_call.1} parent=23 // pred_check_branch
          %162 = sbr.rel (%p160) target = $region28
        $region27: #{tpu_custom_call.1} parent=23 // pred_region
          %s163 = sand.u32 %s41, 1
          %s164 = scalar_lea.sflag [#allocation4], %s163
          %s165 = sand.u32 %s41, 1
          %s166 = smul.addr %s165, 128
          %s167 = scalar_lea.vmem [#allocation3], %s166
          %s168 = smul.u32 4, %s25
          %s170 = ssub.s32 2048, 2048
          %171 = vsyncadd %s164, %s170
          %s172 = smul.addr %s24, 16
          %s173 = sadd.s32 %s168, %s172
          %s174 = smul.addr %s173, 128
          %s175 = scalar_lea.hbm %s0, %s174
          %s176 = sshll.u32 %s167, 4
          %s177 = int_to_ptr.vmem [resolvable:$true] %s176
          %182 = dma.hbm_to_vmem [thread:$0]  %s175, 2048, %s177, %s164, 128, 128, 8
        $region28: #{tpu_custom_call.1} parent=23 // pred_fallthru
          _
      $region24: #{tpu_custom_call.1} parent=5 // pred_fallthru
        _
      %p183 = scmp.le.s32.totalorder 1, %s17
      %p184 = scmp.lt.s32.totalorder %s17, 3
      %p185 = pnand %p183, %p184
      %p186 = pneg %p185
      // Predicated region
      $region29: #{tpu_custom_call.1} parent=5 // pred_check
        _
      $region30: #{tpu_custom_call.1} parent=5 // pred_check_branch
        %188 = sbr.rel (%p185) target = $region32
      $region31: #{tpu_custom_call.1} parent=5 // pred_region
        %s189 = ssub.s32 %s17, 1
        %s190 = sand.u32 %s44, 1
        %s191 = scalar_lea.sflag [#allocation4], %s190
        %s192 = sand.u32 %s44, 1
        %s193 = smul.addr %s192, 128
        %s194 = scalar_lea.vmem [#allocation3], %s193
        // Predicated region
        $region33: #{tpu_custom_call.1} parent=31 // pred_check
          %p195 = pneg %p57
        $region34: #{tpu_custom_call.1} parent=31 // pred_check_branch
          %197 = sbr.rel (%p195) target = $region36
        $region35: #{tpu_custom_call.1} parent=31 // pred_region
          %198 = dma.done %s191, 2048
        $region36: #{tpu_custom_call.1} parent=31 // pred_fallthru
          _
        // Predicated region
        $region37: #{tpu_custom_call.1} parent=31 // pred_check
          %p199 = pneg %p78
        $region38: #{tpu_custom_call.1} parent=31 // pred_check_branch
          %201 = sbr.rel (%p199) target = $region40
        $region39: #{tpu_custom_call.1} parent=31 // pred_region
          %202 = dma.done [#allocation6], 16
        $region40: #{tpu_custom_call.1} parent=31 // pred_fallthru
          _
        %203 = sfence
        %s204 = sand.u32 %s44, 1
        %s205 = scalar_lea.sflag [#allocation4], %s204
        %s206 = sand.u32 %s44, 1
        %s207 = smul.addr %s206, 128
        %s208 = scalar_lea.vmem [#allocation3], %s207
        %p209 = pneg %p57
        %p210 = pneg %p54
        %p211 = pneg %p78
        %p212 = pneg %p75
        %p213 = pneg %p99
        %p214 = pneg %p96
        %p215 = pneg %p127
        %p216 = pneg %p124
        %s217 = sand.u32 %s114, 1
        %s218 = scalar_lea.sflag [#allocation5], %s217
        %s219 = sand.u32 %s114, 1
        %s220 = smul.addr %s219, 128
        %s221 = scalar_lea.vmem [#allocation8], %s220
        %s222 = smul.u32 4, %s27
        %s223 = smul.u32 4, %s27
        %v224 = vld [vmem:[%s194] sm:$0xff]
        %v225 = vld [vmem:[%s194 + $0x8] sm:$0xff]
        %v226 = vld [vmem:[%s194 + $0x10] sm:$0xff]
        %v227 = vld [vmem:[%s194 + $0x18] sm:$0xff]
        %s228 = sld [smem:[#allocation7]]
        %v229 = vstv %s228
        %v230 = vmul.f32 %v224, %v229
        %v231 = vmul.f32 %v225, %v229
        %v232 = vmul.f32 %v226, %v229
        %v233 = vmul.f32 %v227, %v229
        %s234 = scalar_lea.vmem %s194, 32 [#allocation3]
        %v235 = vld [vmem:[%s234] sm:$0xff]
        %v236 = vld [vmem:[%s234 + $0x8] sm:$0xff]
        %v237 = vld [vmem:[%s234 + $0x10] sm:$0xff]
        %v238 = vld [vmem:[%s234 + $0x18] sm:$0xff]
        %s239 = sld [smem:[#allocation7 + $0x1]]
        %v240 = vstv %s239
        %v241 = vmul.f32 %v235, %v240
        %v242 = vmul.f32 %v236, %v240
        %v243 = vmul.f32 %v237, %v240
        %v244 = vmul.f32 %v238, %v240
        %v245 = vadd.f32 %v230, %v241
        %v246 = vadd.f32 %v231, %v242
        %v247 = vadd.f32 %v232, %v243
        %v248 = vadd.f32 %v233, %v244
        %s249 = scalar_lea.vmem %s194, 64 [#allocation3]
        %v250 = vld [vmem:[%s249] sm:$0xff]
        %v251 = vld [vmem:[%s249 + $0x8] sm:$0xff]
        %v252 = vld [vmem:[%s249 + $0x10] sm:$0xff]
        %v253 = vld [vmem:[%s249 + $0x18] sm:$0xff]
        %s254 = sld [smem:[#allocation7 + $0x2]]
        %v255 = vstv %s254
        %v256 = vmul.f32 %v250, %v255
        %v257 = vmul.f32 %v251, %v255
        %v258 = vmul.f32 %v252, %v255
        %v259 = vmul.f32 %v253, %v255
        %v260 = vadd.f32 %v245, %v256
        %v261 = vadd.f32 %v246, %v257
        %v262 = vadd.f32 %v247, %v258
        %v263 = vadd.f32 %v248, %v259
        %s264 = scalar_lea.vmem %s194, 96 [#allocation3]
        %v265 = vld [vmem:[%s264] sm:$0xff]
        %v266 = vld [vmem:[%s264 + $0x8] sm:$0xff]
        %v267 = vld [vmem:[%s264 + $0x10] sm:$0xff]
        %v268 = vld [vmem:[%s264 + $0x18] sm:$0xff]
        %s269 = sld [smem:[#allocation7 + $0x3]]
        %v270 = vstv %s269
        %v271 = vmul.f32 %v265, %v270
        %v272 = vmul.f32 %v266, %v270
        %v273 = vmul.f32 %v267, %v270
        %v274 = vmul.f32 %v268, %v270
        %v275 = vadd.f32 %v260, %v271
        %v276 = vadd.f32 %v261, %v272
        %v277 = vadd.f32 %v262, %v273
        %v278 = vadd.f32 %v263, %v274
        %s279 = sld [smem:[#allocation2]]
        %v280 = vstv %s279
        %v281 = vadd.f32 %v275, %v280
        %v282 = vadd.f32 %v276, %v280
        %v283 = vadd.f32 %v277, %v280
        %v284 = vadd.f32 %v278, %v280
        %v285 = vxor.u32 %v281, 2147483648
        %v286 = vxor.u32 %v282, 2147483648
        %v287 = vxor.u32 %v283, 2147483648
        %v288 = vxor.u32 %v284, 2147483648
        %v289 = vmul.f32 %v285, 1.442695
        %v290 = vpow.pop %v289
        %v291 = vmul.f32 %v286, 1.442695
        %v292 = vpow.pop %v291
        %v293 = vmul.f32 %v287, 1.442695
        %v294 = vpow.pop %v293
        %v295 = vmul.f32 %v288, 1.442695
        %v296 = vpow.pop %v295
        %v297 = vadd.f32 %v290, 1.0
        %v298 = vadd.f32 %v292, 1.0
        %v299 = vadd.f32 %v294, 1.0
        %v300 = vadd.f32 %v296, 1.0
        %v301 = vrcp.pop %v297
        %v302 = vmul.f32 1.0, %v301
        %v303 = vrcp.pop %v298
        %v304 = vmul.f32 1.0, %v303
        %v305 = vrcp.pop %v299
        %v306 = vmul.f32 1.0, %v305
        %v307 = vrcp.pop %v300
        %v308 = vmul.f32 1.0, %v307
        %v309 = vmul.f32 %v224, %v302
        %v310 = vmul.f32 %v225, %v304
        %v311 = vmul.f32 %v226, %v306
        %v312 = vmul.f32 %v227, %v308
        %313 = vst [vmem:[%s221] sm:$0xff] %v309
        %314 = vst [vmem:[%s221 + $0x8] sm:$0xff] %v310
        %315 = vst [vmem:[%s221 + $0x10] sm:$0xff] %v311
        %316 = vst [vmem:[%s221 + $0x18] sm:$0xff] %v312
        %v317 = vld [vmem:[%s234] sm:$0xff]
        %v318 = vld [vmem:[%s234 + $0x8] sm:$0xff]
        %v319 = vld [vmem:[%s234 + $0x10] sm:$0xff]
        %v320 = vld [vmem:[%s234 + $0x18] sm:$0xff]
        %v321 = vmul.f32 %v317, %v302
        %v322 = vmul.f32 %v318, %v304
        %v323 = vmul.f32 %v319, %v306
        %v324 = vmul.f32 %v320, %v308
        %s325 = scalar_lea.vmem %s221, 32 [#allocation8]
        %326 = vst [vmem:[%s325] sm:$0xff] %v321
        %327 = vst [vmem:[%s325 + $0x8] sm:$0xff] %v322
        %328 = vst [vmem:[%s325 + $0x10] sm:$0xff] %v323
        %329 = vst [vmem:[%s325 + $0x18] sm:$0xff] %v324
        %v330 = vld [vmem:[%s249] sm:$0xff]
        %v331 = vld [vmem:[%s249 + $0x8] sm:$0xff]
        %v332 = vld [vmem:[%s249 + $0x10] sm:$0xff]
        %v333 = vld [vmem:[%s249 + $0x18] sm:$0xff]
        %v334 = vmul.f32 %v330, %v302
        %v335 = vmul.f32 %v331, %v304
        %v336 = vmul.f32 %v332, %v306
        %v337 = vmul.f32 %v333, %v308
        %s338 = scalar_lea.vmem %s221, 64 [#allocation8]
        %339 = vst [vmem:[%s338] sm:$0xff] %v334
        %340 = vst [vmem:[%s338 + $0x8] sm:$0xff] %v335
        %341 = vst [vmem:[%s338 + $0x10] sm:$0xff] %v336
        %342 = vst [vmem:[%s338 + $0x18] sm:$0xff] %v337
        %v343 = vld [vmem:[%s264] sm:$0xff]
        %v344 = vld [vmem:[%s264 + $0x8] sm:$0xff]
        %v345 = vld [vmem:[%s264 + $0x10] sm:$0xff]
        %v346 = vld [vmem:[%s264 + $0x18] sm:$0xff]
        %v347 = vmul.f32 %v343, %v302
        %v348 = vmul.f32 %v344, %v304
        %v349 = vmul.f32 %v345, %v306
        %v350 = vmul.f32 %v346, %v308
        %s351 = scalar_lea.vmem %s221, 96 [#allocation8]
        %352 = vst [vmem:[%s351] sm:$0xff] %v347
        %353 = vst [vmem:[%s351 + $0x8] sm:$0xff] %v348
        %354 = vst [vmem:[%s351 + $0x10] sm:$0xff] %v349
        %355 = vst [vmem:[%s351 + $0x18] sm:$0xff] %v350
        %s356 = sand.u32 %s114, 1
        %s357 = scalar_lea.sflag [#allocation5], %s356
        %s358 = sand.u32 %s114, 1
        %s359 = smul.addr %s358, 128
        %s360 = scalar_lea.vmem [#allocation8], %s359
        // Predicated region
        $region41: #{tpu_custom_call.1} parent=31 // pred_check
          %p361 = pneg %p124
        $region42: #{tpu_custom_call.1} parent=31 // pred_check_branch
          %363 = sbr.rel (%p361) target = $region44
        $region43: #{tpu_custom_call.1} parent=31 // pred_region
          %s364 = smul.u32 4, %s27
          %s366 = ssub.s32 2048, 2048
          %367 = vsyncadd %s357, %s366
          %s368 = smul.addr %s26, 16
          %s369 = sadd.s32 %s364, %s368
          %s370 = smul.addr %s369, 128
          %s371 = scalar_lea.hbm %s3, %s370
          %s372 = sshll.u32 %s360, 4
          %s373 = int_to_ptr.vmem [resolvable:$true] %s372
          %378 = dma.vmem_to_hbm [thread:$0]  %s373, 2048, %s371, %s357, 128, 128, 8
        $region44: #{tpu_custom_call.1} parent=31 // pred_fallthru
          _
      $region32: #{tpu_custom_call.1} parent=5 // pred_fallthru
        _
      %p379 = scmp.le.s32.totalorder 2, %s17
      // Predicated region
      $region45: #{tpu_custom_call.1} parent=5 // pred_check
        %p380 = pneg %p379
      $region46: #{tpu_custom_call.1} parent=5 // pred_check_branch
        %382 = sbr.rel (%p380) target = $region48
      $region47: #{tpu_custom_call.1} parent=5 // pred_region
        %s383 = ssub.s32 %s17, 2
        // Predicated region
        $region49: #{tpu_custom_call.1} parent=47 // pred_check
          %p384 = pneg %p130
        $region50: #{tpu_custom_call.1} parent=47 // pred_check_branch
          %386 = sbr.rel (%p384) target = $region52
        $region51: #{tpu_custom_call.1} parent=47 // pred_region
          %s387 = sand.u32 %s115, 1
          %s388 = scalar_lea.sflag [#allocation5], %s387
          %s389 = sand.u32 %s115, 1
          %s390 = smul.addr %s389, 128
          %s391 = scalar_lea.vmem [#allocation8], %s390
          %392 = dma.done %s388, 2048
        $region52: #{tpu_custom_call.1} parent=47 // pred_fallthru
          _
      $region48: #{tpu_custom_call.1} parent=5 // pred_fallthru
        _
    $region6: #{tpu_custom_call.1} parent=1 // loop_footer
      %s21 = sadd.s32 1, %s17
    $region7: #{tpu_custom_call.1} parent=1 // loop_footer_branch
      %16 = sbr.rel target = $region3
    $region8: #{tpu_custom_call.1} parent=1 // loop_exit
      _
    %393 = vsyncpa [#allocation4], 1
    %s394 = scalar_lea.sflag [#allocation4], 1
    %395 = vsyncpa %s394, 1
    %396 = vsyncpa [#allocation5], 1
    %s397 = scalar_lea.sflag [#allocation5], 1
    %398 = vsyncpa %s397, 1
    %399 = vsyncpa [#allocation6], 1
    %s400 = scalar_lea.sflag [#allocation6], 1
    %401 = vsyncpa %s400, 1

</llo_original>
